<compile_context>
chip_gen: v7x
topology: tpu7x:2x2x1
jax: 0.10.0
libtpu: 0.0.40
codegen_flags: <defaults>
</compile_context>

<pallas_src>
import functools

import jax
import jax.numpy as jnp
from jax.experimental import pallas as pl
from jax.experimental.pallas import tpu as pltpu

LANE = 128


def _round_up(x, m):
    return ((x + m - 1) // m) * m


def bm_kernel(x_ref, w1_ref, b1_ref, w2_ref, b2_ref, out_ref):
    # x:  (TB, D_in)          bf16     w1: (D_in, P_pad)      bf16   b1: (1, P_pad)      f32
    # w2: (P_pad, D_out_pad)  bf16     b2: (1, D_out_pad)     f32
    # out:(TB, D_out_pad)     f32
    h = jnp.dot(x_ref[...], w1_ref[...], preferred_element_type=jnp.float32)
    h = jax.nn.sigmoid(h + b1_ref[...])          # eval-mode dropout -> identity, then sigmoid
    o = jnp.dot(h.astype(w2_ref.dtype), w2_ref[...],
                preferred_element_type=jnp.float32)
    out_ref[...] = jnp.tanh(o + b2_ref[...]).astype(out_ref.dtype)


def prepare_biological_module_weights(w1, b1, w2, b2, nonzero_ind=None):
    """One-time weight prep (call once, NOT per forward).

    w1: (input_dim, pathway_dim)  -- transposed vs torch's (out, in) layout
    w2: (pathway_dim, output_dim) -- transposed vs torch
    Folds the nonzero_ind sparsity mask into w1, casts MXU operands to bf16,
    and zero-pads the pathway and output dims up to lane-dense multiples of 128.
    """
    d_in, p = w1.shape
    d_out = w2.shape[1]
    p_pad = _round_up(p, LANE)
    d_out_pad = _round_up(d_out, LANE)

    if nonzero_ind is not None:
        # torch: mask[nonzero_ind[1], nonzero_ind[0]] = 1 on the (path, in) weight;
        # for our transposed (in, path) layout that is mask_t[ind0, ind1] = 1.
        in_idx, path_idx = nonzero_ind[0], nonzero_ind[1]
        mask_t = jnp.zeros_like(w1).at[in_idx, path_idx].set(1.0)
        w1 = w1 * mask_t

    # Padded pathway columns: weights and bias are 0 -> sigmoid(0)=0.5, but the
    # corresponding W2 rows are 0, so they contribute nothing to the output.
    w1_bf = jnp.zeros((d_in, p_pad), jnp.bfloat16).at[:, :p].set(
        w1.astype(jnp.bfloat16))
    b1_2d = jnp.zeros((1, p_pad), jnp.float32).at[:, :p].set(
        b1.astype(jnp.float32))
    # Padded output columns give tanh(0 + 0) = 0 and are sliced off outside.
    w2_bf = jnp.zeros((p_pad, d_out_pad), jnp.bfloat16).at[:p, :d_out].set(
        w2.astype(jnp.bfloat16))
    b2_2d = jnp.zeros((1, d_out_pad), jnp.float32).at[:, :d_out].set(
        b2.astype(jnp.float32))
    return w1_bf, b1_2d, w2_bf, b2_2d, d_out


@functools.partial(jax.jit, static_argnames=("d_out", "block_b"))
def biological_module_forward(x, w1_bf, b1_2d, w2_bf, b2_2d, *, d_out,
                              block_b=512):
    """x: (B, input_dim) f32. Remaining args from prepare_biological_module_weights."""
    b, d_in = x.shape
    p_pad = w1_bf.shape[1]
    d_out_pad = w2_bf.shape[1]

    # Batch tile: multiple of 16 sublanes (bf16 packing), capped so the
    # double-buffered x/out tiles plus resident weights stay well inside the
    # scoped VMEM limit (sized against v7x's 64 MiB VMEM as well as v5e/v6e).
    tb = min(_round_up(b, 16), block_b)
    b_pad = _round_up(b, tb)

    x_bf = x.astype(jnp.bfloat16)
    if b_pad != b:
        x_bf = jnp.zeros((b_pad, d_in), jnp.bfloat16).at[:b].set(x_bf)

    grid = (b_pad // tb,)
    flops = 2 * b_pad * d_in * p_pad + 2 * b_pad * p_pad * d_out_pad
    bytes_accessed = (x_bf.size * 2 + w1_bf.size * 2 + w2_bf.size * 2
                      + b1_2d.size * 4 + b2_2d.size * 4 + b_pad * d_out_pad * 4)

    out = pl.pallas_call(
        bm_kernel,
        out_shape=jax.ShapeDtypeStruct((b_pad, d_out_pad), jnp.float32),
        grid=grid,
        in_specs=[
            pl.BlockSpec((tb, d_in), lambda i: (i, 0)),          # x: tiled over batch
            pl.BlockSpec((d_in, p_pad), lambda i: (0, 0)),       # w1: VMEM-resident
            pl.BlockSpec((1, p_pad), lambda i: (0, 0)),          # b1: VMEM-resident
            pl.BlockSpec((p_pad, d_out_pad), lambda i: (0, 0)),  # w2: VMEM-resident
            pl.BlockSpec((1, d_out_pad), lambda i: (0, 0)),      # b2: VMEM-resident
        ],
        out_specs=pl.BlockSpec((tb, d_out_pad), lambda i: (i, 0)),
        compiler_params=pltpu.CompilerParams(
            dimension_semantics=("parallel",),   # batch steps shard across TCs on v7x
        ),
        cost_estimate=pl.CostEstimate(
            flops=flops,
            transcendentals=b_pad * (p_pad + d_out_pad),
            bytes_accessed=bytes_accessed,
        ),
    )(x_bf, w1_bf, b1_2d, w2_bf, b2_2d)

    return out[:b, :d_out]


if __name__ == "__main__":
    key = jax.random.PRNGKey(0)
    k_x, k_w1, k_b1, k_w2, k_b2, k_idx = jax.random.split(key, 6)

    batch = 8
    input_dim = 32
    pathway_dim = 16
    output_dim = 8

    x = jax.random.normal(k_x, (batch, input_dim), dtype=jnp.float32)
    # Weights stored transposed relative to torch's nn.Linear (out, in) layout.
    w1 = jax.random.normal(k_w1, (input_dim, pathway_dim), dtype=jnp.float32) * 0.1
    b1 = jax.random.normal(k_b1, (pathway_dim,), dtype=jnp.float32) * 0.1
    w2 = jax.random.normal(k_w2, (pathway_dim, output_dim), dtype=jnp.float32) * 0.1
    b2 = jax.random.normal(k_b2, (output_dim,), dtype=jnp.float32) * 0.1

    # Deterministic synthetic nonzero_ind: (input-index array, pathway-index array).
    n_nz = 64
    in_idx = jax.random.randint(k_idx, (n_nz,), 0, input_dim)
    path_idx = jax.random.randint(jax.random.fold_in(k_idx, 1), (n_nz,), 0, pathway_dim)
    nonzero_ind = (in_idx, path_idx)

    # One-time weight prep (mask fold + bf16 cast + lane padding) -- outside the hot path.
    w1_bf, b1_2d, w2_bf, b2_2d, d_out = prepare_biological_module_weights(
        w1, b1, w2, b2, nonzero_ind)

    out = biological_module_forward(x, w1_bf, b1_2d, w2_bf, b2_2d, d_out=d_out)
    jax.block_until_ready(out)
    assert out.shape == (batch, output_dim)

    # Reference 1: pure-JAX with the same bf16 MXU operands + f32 accumulation.
    mask_t = jnp.zeros_like(w1).at[in_idx, path_idx].set(1.0)
    w1m_bf = (w1 * mask_t).astype(jnp.bfloat16)
    h_ref = jax.nn.sigmoid(
        jnp.dot(x.astype(jnp.bfloat16), w1m_bf, preferred_element_type=jnp.float32) + b1)
    ref = jnp.tanh(
        jnp.dot(h_ref.astype(jnp.bfloat16), w2.astype(jnp.bfloat16),
                preferred_element_type=jnp.float32) + b2)
    assert jnp.allclose(out, ref, atol=2e-3, rtol=2e-3), "mismatch vs bf16 reference"

    # Reference 2: full-f32 reference with bf16-level tolerance.
    h32 = jax.nn.sigmoid(x @ (w1 * mask_t) + b1)
    ref32 = jnp.tanh(h32 @ w2 + b2)
    assert jnp.allclose(out, ref32, atol=2e-2, rtol=2e-2), "mismatch vs f32 reference"

    print("KERNEL_OK")
</pallas_src>

<mosaic_0001>
module attributes {stable_mosaic.version = 11 : i64} {
  func.func @bm_kernel(%arg0: i32, %arg1: memref<16x32xbf16, #tpu.memory_space<vmem>>, %arg2: memref<32x128xbf16, #tpu.memory_space<vmem>>, %arg3: memref<1x128xf32, #tpu.memory_space<vmem>>, %arg4: memref<128x128xbf16, #tpu.memory_space<vmem>>, %arg5: memref<1x128xf32, #tpu.memory_space<vmem>>, %arg6: memref<16x128xf32, #tpu.memory_space<vmem>>) attributes {dimension_semantics = [#tpu.dimension_semantics<parallel>], iteration_bounds = array<i64: 1>, scalar_prefetch = 0 : i64, scratch_operands = 0 : i64, tpu.core_type = #tpu.core_type<tc>, window_params = [{transform_indices = @transform_0, window_bounds = array<i64: 16, 32>}, {pipeline_mode = #tpu.pipeline_mode<synchronous>, transform_indices = @transform_1, window_bounds = array<i64: 32, 128>}, {pipeline_mode = #tpu.pipeline_mode<synchronous>, transform_indices = @transform_2, window_bounds = array<i64: 1, 128>}, {pipeline_mode = #tpu.pipeline_mode<synchronous>, transform_indices = @transform_3, window_bounds = array<i64: 128, 128>}, {pipeline_mode = #tpu.pipeline_mode<synchronous>, transform_indices = @transform_4, window_bounds = array<i64: 1, 128>}, {transform_indices = @transform_5, window_bounds = array<i64: 16, 128>}]} {
    %c0 = arith.constant 0 : index
    %c0_0 = arith.constant 0 : index
    %0 = vector.load %arg1[%c0, %c0_0] : memref<16x32xbf16, #tpu.memory_space<vmem>>, vector<16x32xbf16>
    %c0_1 = arith.constant 0 : index
    %c0_2 = arith.constant 0 : index
    %1 = vector.load %arg2[%c0_1, %c0_2] : memref<32x128xbf16, #tpu.memory_space<vmem>>, vector<32x128xbf16>
    %cst = arith.constant dense<0.000000e+00> : vector<16x128xf32>
    %2 = tpu.matmul %0, %1, %cst {dimension_numbers = #tpu.dot_dimension_numbers<[1], [0], [0], [1], [0, 0, 1, 1], [], []>} : vector<16x32xbf16>, vector<32x128xbf16>, vector<16x128xf32> -> vector<16x128xf32>
    %c0_3 = arith.constant 0 : index
    %c0_4 = arith.constant 0 : index
    %3 = vector.load %arg3[%c0_3, %c0_4] : memref<1x128xf32, #tpu.memory_space<vmem>>, vector<1x128xf32>
    %4 = vector.broadcast %3 : vector<1x128xf32> to vector<16x128xf32>
    %5 = arith.addf %2, %4 : vector<16x128xf32>
    %6 = arith.negf %5 : vector<16x128xf32>
    %7 = math.exp %6 : vector<16x128xf32>
    %cst_5 = arith.constant 1.000000e+00 : f32
    %8 = vector.broadcast %cst_5 : f32 to vector<16x128xf32>
    %9 = arith.addf %8, %7 : vector<16x128xf32>
    %10 = arith.divf %8, %9 : vector<16x128xf32>
    %11 = arith.truncf %10 : vector<16x128xf32> to vector<16x128xbf16>
    %c0_6 = arith.constant 0 : index
    %c0_7 = arith.constant 0 : index
    %12 = vector.load %arg4[%c0_6, %c0_7] : memref<128x128xbf16, #tpu.memory_space<vmem>>, vector<128x128xbf16>
    %cst_8 = arith.constant dense<0.000000e+00> : vector<16x128xf32>
    %13 = tpu.matmul %11, %12, %cst_8 {dimension_numbers = #tpu.dot_dimension_numbers<[1], [0], [0], [1], [0, 0, 1, 1], [], []>} : vector<16x128xbf16>, vector<128x128xbf16>, vector<16x128xf32> -> vector<16x128xf32>
    %c0_9 = arith.constant 0 : index
    %c0_10 = arith.constant 0 : index
    %14 = vector.load %arg5[%c0_9, %c0_10] : memref<1x128xf32, #tpu.memory_space<vmem>>, vector<1x128xf32>
    %15 = vector.broadcast %14 : vector<1x128xf32> to vector<16x128xf32>
    %16 = arith.addf %13, %15 : vector<16x128xf32>
    %17 = math.tanh %16 : vector<16x128xf32>
    %c0_11 = arith.constant 0 : index
    %c0_12 = arith.constant 0 : index
    %18 = vector.load %arg6[%c0_11, %c0_12] : memref<16x128xf32, #tpu.memory_space<vmem>>, vector<16x128xf32>
    tpu.vector_store %arg6[%c0_11, %c0_12], %17 {strides = array<i32>} : memref<16x128xf32, #tpu.memory_space<vmem>>, vector<16x128xf32>,
    return
  }
  func.func @transform_0(%arg0: i32) -> (i32, i32) {
    %c0_i32 = arith.constant 0 : i32
    %c0_i32_0 = arith.constant 0 : i32
    return %arg0, %c0_i32 : i32, i32
  }
  func.func @transform_1(%arg0: i32) -> (i32, i32) {
    %c0_i32 = arith.constant 0 : i32
    %c0_i32_0 = arith.constant 0 : i32
    %c0_i32_1 = arith.constant 0 : i32
    return %c0_i32, %c0_i32_0 : i32, i32
  }
  func.func @transform_2(%arg0: i32) -> (i32, i32) {
    %c0_i32 = arith.constant 0 : i32
    %c0_i32_0 = arith.constant 0 : i32
    %c0_i32_1 = arith.constant 0 : i32
    return %c0_i32, %c0_i32_0 : i32, i32
  }
  func.func @transform_3(%arg0: i32) -> (i32, i32) {
    %c0_i32 = arith.constant 0 : i32
    %c0_i32_0 = arith.constant 0 : i32
    %c0_i32_1 = arith.constant 0 : i32
    return %c0_i32, %c0_i32_0 : i32, i32
  }
  func.func @transform_4(%arg0: i32) -> (i32, i32) {
    %c0_i32 = arith.constant 0 : i32
    %c0_i32_0 = arith.constant 0 : i32
    %c0_i32_1 = arith.constant 0 : i32
    return %c0_i32, %c0_i32_0 : i32, i32
  }
  func.func @transform_5(%arg0: i32) -> (i32, i32) {
    %c0_i32 = arith.constant 0 : i32
    %c0_i32_0 = arith.constant 0 : i32
    return %arg0, %c0_i32 : i32, i32
  }
}

</mosaic_0001>

<llo_original>
// kernel: biological_module_forward.1
$region0: #{biological_module_forward.1}
  #allocation0 [shape = 'u32[]', space=smem, size = 0x4, offset = 0x4, fixed_abs, tag = 'smem constant byte address 0x4 - core index']
  #allocation1 [shape = 'u32[144,128]{1,0:T(1,128)}', space=vmem, size = 0x12000, scoped, tag = 'internal scratch']
  %s0 = inlined_call_operand.vmem [shape: bf16[16,32], index: 0, kind: input, shape index: {}]
  %s1 = inlined_call_operand.vmem [shape: bf16[32,128], index: 1, kind: input, shape index: {}]
  %s2 = inlined_call_operand.vmem [shape: f32[1,128], index: 2, kind: input, shape index: {}]
  %s3 = inlined_call_operand.hbm [shape: bf16[128,128], index: 3, kind: input, shape index: {}]
  %s4 = inlined_call_operand.vmem [shape: f32[1,128], index: 4, kind: input, shape index: {}]
  %s5 = inlined_call_operand.vmem [shape: f32[16,128], index: 5, kind: output, shape index: {}]
  %s6 = sld [smem:[#allocation0]]
  $region34: #{biological_module_forward.1} parent=0
    _
  %s8 = ssub.s32 1, %s6
  %s9 = scalar_select 0, %s8, %s6
  $region1: #{biological_module_forward.1} parent=0
    #allocation2 [shape = 'u8[32768]{0}', space=vmem, size = 0x8000, scoped, tag = 'input window, operand 3, single buffered']
    #allocation3 [shape = 's32[1]{0}', space=sflag, size = 0x4, scoped, tag = 'scoped memory for biological_module_forward.1']
    %10 = vsyncpa [#allocation3], 0
    // Predicated region
    $region2: #{biological_module_forward.1} parent=1 // pred_check
      _
    $region3: #{biological_module_forward.1} parent=1 // pred_check_branch
      %12 = sbr.rel (0) target = $region5
    $region4: #{biological_module_forward.1} parent=1 // pred_region
      _
    $region5: #{biological_module_forward.1} parent=1 // pred_fallthru
      _
    // Predicated region
    $region6: #{biological_module_forward.1} parent=1 // pred_check
      _
    $region7: #{biological_module_forward.1} parent=1 // pred_check_branch
      %14 = sbr.rel (0) target = $region9
    $region8: #{biological_module_forward.1} parent=1 // pred_region
      _
    $region9: #{biological_module_forward.1} parent=1 // pred_fallthru
      _
    // Predicated region
    $region10: #{biological_module_forward.1} parent=1 // pred_check
      _
    $region11: #{biological_module_forward.1} parent=1 // pred_check_branch
      %16 = sbr.rel (0) target = $region13
    $region12: #{biological_module_forward.1} parent=1 // pred_region
      _
    $region13: #{biological_module_forward.1} parent=1 // pred_fallthru
      _
    // Predicated region
    $region14: #{biological_module_forward.1} parent=1 // pred_check
      _
    $region15: #{biological_module_forward.1} parent=1 // pred_check_branch
      %18 = sbr.rel (0) target = $region17
    $region16: #{biological_module_forward.1} parent=1 // pred_region
      %s20 = ssub.s32 1024, 1024
      %21 = vsyncadd [#allocation3], %s20
      %s22 = sshll.u32 [#allocation2], 4
      %s23 = int_to_ptr.vmem [resolvable:$true] %s22
      %28 = dma.hbm_to_vmem [thread:$0]  %s3, 1024, %s23, [#allocation3], 64, 64, 4
    $region17: #{biological_module_forward.1} parent=1 // pred_fallthru
      _
    // Predicated region
    $region18: #{biological_module_forward.1} parent=1 // pred_check
      _
    $region19: #{biological_module_forward.1} parent=1 // pred_check_branch
      %30 = sbr.rel (0) target = $region21
    $region20: #{biological_module_forward.1} parent=1 // pred_region
      _
    $region21: #{biological_module_forward.1} parent=1 // pred_fallthru
      _
    // Predicated region
    $region22: #{biological_module_forward.1} parent=1 // pred_check
      _
    $region23: #{biological_module_forward.1} parent=1 // pred_check_branch
      %32 = sbr.rel (0) target = $region25
    $region24: #{biological_module_forward.1} parent=1 // pred_region
      %33 = dma.done [#allocation3], 1024
    $region25: #{biological_module_forward.1} parent=1 // pred_fallthru
      _
    %v35 = vld [vmem:[%s0] sm:$0xf]
    %v36 = vld [vmem:[%s0 + $0x4] sm:$0xf]
    %v37 = vld [vmem:[%s1] sm:$0xf]
    %v38 = vld [vmem:[%s1 + $0x4] sm:$0xf]
    %v39 = vld [vmem:[%s1 + $0x8] sm:$0xf]
    %v40 = vld [vmem:[%s1 + $0xc] sm:$0xf]
    %v41 = vld [vmem:[%s2] sm:$0x1]
    %v43 = vlaneseq
    %v44 = vshrl.u32 %v43, 7
    %v45 = vsub.s32 0, %v44
    %v46 = vrot.slane %v41, %v45
    %v50 = vunpack.c.l.b16 %v35
    %v51 = vunpack.c.l.b16 %v36
    %v52 = vpack.c.b16 %v51, %v50
    %v57 = vunpack.c.l.b16 %v37
    %v58 = vunpack.c.l.b16 %v38
    %v59 = vunpack.c.l.b16 %v39
    %v60 = vunpack.c.l.b16 %v40
    %v61 = vpack.c.b16 %v58, %v57
    %v62 = vpack.c.b16 %v60, %v59
    %vm65 = vcmask 261120
    %v67 = vsel %vm65, %v52, 0
    %69 = vmatprep.subr.bf16.mxu0 0
    %70 = vmatpush1.bf16.msra.mxu0 %v61
    %71 = vmatprep.subr.bf16.mxu0 0
    %72 = vmatpush1.bf16.msra.mxu0 %v62
    %73 = vmatprep.subr.bf16.mxu0 0
    %74 = vmatpush1.bf16.msra.mxu0 0
    %75 = vmatprep.subr.bf16.mxu0 0
    %76 = vmatpush1.bf16.msra.mxu0 0
    %77 = vmatprep.subr.bf16.mxu0 0
    %78 = vmatpush1.bf16.msra.mxu0 0
    %79 = vmatprep.subr.bf16.mxu0 0
    %80 = vmatpush1.bf16.msra.mxu0 0
    %81 = vmatprep.subr.bf16.mxu0 0
    %82 = vmatpush1.bf16.msra.mxu0 0
    %83 = vmatprep.subr.bf16.mxu0 0
    %84 = vmatpush1.bf16.msra.mxu0 0
    %85 = vmatprep.subr.bf16.mxu0 0
    %86 = vmatpush1.bf16.msra.mxu0 0
    %87 = vmatprep.subr.bf16.mxu0 0
    %88 = vmatpush1.bf16.msra.mxu0 0
    %89 = vmatprep.subr.bf16.mxu0 0
    %90 = vmatpush1.bf16.msra.mxu0 0
    %91 = vmatprep.subr.bf16.mxu0 0
    %92 = vmatpush1.bf16.msra.mxu0 0
    %93 = vmatprep.subr.bf16.mxu0 0
    %94 = vmatpush1.bf16.msra.mxu0 0
    %95 = vmatprep.subr.bf16.mxu0 0
    %96 = vmatpush1.bf16.msra.mxu0 0
    %97 = vmatprep.subr.bf16.mxu0 0
    %98 = vmatpush1.bf16.msra.mxu0 0
    %99 = vmatprep.subr.bf16.mxu0 0
    %100 = vmatpush1.bf16.msra.mxu0 0
    %101 = vmatprep.mubr.bf16.mxu0 0
    %102 = vmatmul.mubr.bf16.gmra.mrb[0].mxu0 %v67
    %v103 = vpop.f32.mrb[0].mxu0
    %v104 = vadd.f32 %v46, %v103
    %v105 = vpop.f32.mrb[0].mxu0
    %v106 = vpop.f32.mrb[0].mxu0
    %v107 = vadd.f32 %v46, %v106
    %v108 = vpop.f32.mrb[0].mxu0
    %109 = vdwg.mxu0
    %v110 = vxor.u32 %v104, 2147483648
    %v111 = vxor.u32 %v107, 2147483648
    %v112 = vmul.f32 %v110, 1.442695
    %v113 = vpow.pop %v112
    %v114 = vmul.f32 %v111, 1.442695
    %v115 = vpow.pop %v114
    %v116 = vadd.f32 %v113, 1.0
    %v117 = vadd.f32 %v115, 1.0
    %v118 = vrcp.pop %v116
    %v119 = vmul.f32 1.0, %v118
    %v120 = vrcp.pop %v117
    %v121 = vmul.f32 1.0, %v120
    %v122 = vpack.c.bf16 %v121, %v119
    %v123 = vld [vmem:[#allocation2] sm:$0xf]
    %v124 = vld [vmem:[#allocation2 + $0x4] sm:$0xf]
    %v125 = vld [vmem:[#allocation2 + $0x8] sm:$0xf]
    %v126 = vld [vmem:[#allocation2 + $0xc] sm:$0xf]
    %v127 = vld [vmem:[#allocation2 + $0x10] sm:$0xf]
    %v128 = vld [vmem:[#allocation2 + $0x14] sm:$0xf]
    %v129 = vld [vmem:[#allocation2 + $0x18] sm:$0xf]
    %v130 = vld [vmem:[#allocation2 + $0x1c] sm:$0xf]
    %v131 = vld [vmem:[#allocation2 + $0x20] sm:$0xf]
    %v132 = vld [vmem:[#allocation2 + $0x24] sm:$0xf]
    %v133 = vld [vmem:[#allocation2 + $0x28] sm:$0xf]
    %v134 = vld [vmem:[#allocation2 + $0x2c] sm:$0xf]
    %v135 = vld [vmem:[#allocation2 + $0x30] sm:$0xf]
    %v136 = vld [vmem:[#allocation2 + $0x34] sm:$0xf]
    %v137 = vld [vmem:[#allocation2 + $0x38] sm:$0xf]
    %v138 = vld [vmem:[#allocation2 + $0x3c] sm:$0xf]
    %v139 = vld [vmem:[%s4] sm:$0x1]
    %v141 = vlaneseq
    %v142 = vshrl.u32 %v141, 7
    %v143 = vsub.s32 0, %v142
    %v144 = vrot.slane %v139, %v143
    %v162 = vunpack.c.l.b16 %v123
    %v163 = vunpack.c.l.b16 %v124
    %v164 = vunpack.c.l.b16 %v125
    %v165 = vunpack.c.l.b16 %v126
    %v166 = vunpack.c.l.b16 %v127
    %v167 = vunpack.c.l.b16 %v128
    %v168 = vunpack.c.l.b16 %v129
    %v169 = vunpack.c.l.b16 %v130
    %v170 = vunpack.c.l.b16 %v131
    %v171 = vunpack.c.l.b16 %v132
    %v172 = vunpack.c.l.b16 %v133
    %v173 = vunpack.c.l.b16 %v134
    %v174 = vunpack.c.l.b16 %v135
    %v175 = vunpack.c.l.b16 %v136
    %v176 = vunpack.c.l.b16 %v137
    %v177 = vunpack.c.l.b16 %v138
    %v178 = vpack.c.b16 %v163, %v162
    %v179 = vpack.c.b16 %v165, %v164
    %v180 = vpack.c.b16 %v167, %v166
    %v181 = vpack.c.b16 %v169, %v168
    %v182 = vpack.c.b16 %v171, %v170
    %v183 = vpack.c.b16 %v173, %v172
    %v184 = vpack.c.b16 %v175, %v174
    %v185 = vpack.c.b16 %v177, %v176
    %194 = vmatprep.subr.bf16.mxu0 0
    %195 = vmatpush1.bf16.msra.mxu0 %v178
    %196 = vmatprep.subr.bf16.mxu0 0
    %197 = vmatpush1.bf16.msra.mxu0 %v179
    %198 = vmatprep.subr.bf16.mxu0 0
    %199 = vmatpush1.bf16.msra.mxu0 %v180
    %200 = vmatprep.subr.bf16.mxu0 0
    %201 = vmatpush1.bf16.msra.mxu0 %v181
    %202 = vmatprep.subr.bf16.mxu0 0
    %203 = vmatpush1.bf16.msra.mxu0 %v182
    %204 = vmatprep.subr.bf16.mxu0 0
    %205 = vmatpush1.bf16.msra.mxu0 %v183
    %206 = vmatprep.subr.bf16.mxu0 0
    %207 = vmatpush1.bf16.msra.mxu0 %v184
    %208 = vmatprep.subr.bf16.mxu0 0
    %209 = vmatpush1.bf16.msra.mxu0 %v185
    %210 = vmatprep.subr.bf16.mxu0 0
    %211 = vmatpush1.bf16.msra.mxu0 0
    %212 = vmatprep.subr.bf16.mxu0 0
    %213 = vmatpush1.bf16.msra.mxu0 0
    %214 = vmatprep.subr.bf16.mxu0 0
    %215 = vmatpush1.bf16.msra.mxu0 0
    %216 = vmatprep.subr.bf16.mxu0 0
    %217 = vmatpush1.bf16.msra.mxu0 0
    %218 = vmatprep.subr.bf16.mxu0 0
    %219 = vmatpush1.bf16.msra.mxu0 0
    %220 = vmatprep.subr.bf16.mxu0 0
    %221 = vmatpush1.bf16.msra.mxu0 0
    %222 = vmatprep.subr.bf16.mxu0 0
    %223 = vmatpush1.bf16.msra.mxu0 0
    %224 = vmatprep.subr.bf16.mxu0 0
    %225 = vmatpush1.bf16.msra.mxu0 0
    %226 = vmatprep.mubr.bf16.mxu0 0
    %227 = vmatmul.mubr.bf16.gmra.mrb[0].mxu0 %v122
    %v228 = vpop.f32.mrb[0].mxu0
    %v229 = vadd.f32 %v144, %v228
    %v230 = vpop.f32.mrb[0].mxu0
    %v231 = vpop.f32.mrb[0].mxu0
    %v232 = vadd.f32 %v144, %v231
    %v233 = vpop.f32.mrb[0].mxu0
    %234 = vdwg.mxu0
    %v235 = vtanh.pop %v229
    %v236 = vtanh.pop %v232
    %237 = vst [vmem:[%s5] sm:$0xff] %v235
    %238 = vst [vmem:[%s5 + $0x8] sm:$0xff] %v236
    // Predicated region
    $region26: #{biological_module_forward.1} parent=1 // pred_check
      _
    $region27: #{biological_module_forward.1} parent=1 // pred_check_branch
      %240 = sbr.rel (0) target = $region29
    $region28: #{biological_module_forward.1} parent=1 // pred_region
      _
    $region29: #{biological_module_forward.1} parent=1 // pred_fallthru
      _
    // Predicated region
    $region30: #{biological_module_forward.1} parent=1 // pred_check
      _
    $region31: #{biological_module_forward.1} parent=1 // pred_check_branch
      %242 = sbr.rel (0) target = $region33
    $region32: #{biological_module_forward.1} parent=1 // pred_region
      _
    $region33: #{biological_module_forward.1} parent=1 // pred_fallthru
      _
    %243 = vsyncpa [#allocation3], 1

</llo_original>
